<compile_context>
chip_gen: v6e
topology: v6e:2x2x1
jax: 0.10.0
libtpu: 0.0.40
codegen_flags: <defaults>
</compile_context>

<pallas_src>
import functools
import math

import jax
import jax.numpy as jnp
from jax.experimental import pallas as pl
from jax.experimental.pallas import tpu as pltpu


def _rmsnorm_kernel(x_ref, w_ref, o_ref, *, eps, d, fold, compute_dtype):
    """x_ref: (TM, fold*d), w_ref: (1, d), o_ref: (TM, fold*d)."""
    x = x_ref[...]                          # whole tile, single VMEM load
    w = w_ref[...].astype(compute_dtype)    # (1, d), broadcasts over rows
    inv_d = 1.0 / d
    # Static unroll over packed token segments (fold == 1 for lane-aligned D).
    for s in range(fold):
        xs = x[:, s * d:(s + 1) * d]                               # (TM, d)
        xf = xs.astype(jnp.float32)                                # ssq in f32
        ssq = jnp.sum(xf * xf, axis=-1, keepdims=True)             # (TM, 1)
        norm = jnp.sqrt(ssq * inv_d)                               # sqrt(mean(x^2))
        inv = pl.reciprocal(norm + eps, approx=False)              # eps outside sqrt
        out = w * xs.astype(compute_dtype) * inv.astype(compute_dtype)
        o_ref[:, s * d:(s + 1) * d] = out.astype(o_ref.dtype)


def _vmem_capacity_bytes():
    try:
        return int(pltpu.get_tpu_info().vmem_capacity_bytes)
    except Exception:
        return 64 * 1024 * 1024   # v7x per-TC size; safe lower bound everywhere


def _round_up(a, b):
    return (a + b - 1) // b * b


def rmsnorm_pallas(x, weight, eps=1e-6, max_block_tokens=None):
    """x: (..., D); weight: (D,). Returns RMSNorm(x) with the torch semantics."""
    orig_shape = x.shape
    D = orig_shape[-1]
    x2d = x.reshape(-1, D)
    M = x2d.shape[0]

    itemsize = jnp.dtype(x.dtype).itemsize
    g = max(8, 32 // itemsize)   # sublane multiple: 8 f32, 16 bf16, 32 int8/fp8

    # Final multiply/store dtype: native bf16 on bf16 inputs, else f32.
    compute_dtype = jnp.bfloat16 if x.dtype == jnp.bfloat16 else jnp.float32

    # Lane-density fold: pack `fold` tokens per row so the store width is a
    # multiple of 128 lanes (avoids masked partial stores when D < 128 or
    # D % 128 != 0).  Pure metadata reshape of a contiguous array.
    fold = 1
    if D % 128 != 0:
        f = 128 // math.gcd(D, 128)
        if 1 < f <= 16 and M % f == 0:
            fold = f
    Dp = D * fold
    M_eff = M // fold
    if fold > 1:
        x2d = x2d.reshape(M_eff, Dp)

    # Token tile from VMEM budget: in + out tiles, each double-buffered.
    cap = _vmem_capacity_bytes()
    budget = min(int(cap * 0.65), 48 * 1024 * 1024)
    tm_cap = max(g, min(1024, budget // (4 * Dp * itemsize)))
    if max_block_tokens is not None:
        tm_cap = max(g, min(tm_cap, (max_block_tokens // g) * g))

    pad_rows = 0
    if M_eff <= tm_cap:
        TM = M_eff                      # single block == full array dims
        Mp = M_eff
    else:
        # Prefer a TM (multiple of g) that divides M_eff -> no padding pass.
        TM = None
        t = (min(tm_cap, M_eff) // g) * g
        while t >= g:
            if M_eff % t == 0:
                TM = t
                break
            t -= g
        if TM is None:
            TM = max(g, (tm_cap // g) * g)
            Mp = _round_up(M_eff, TM)
            pad_rows = Mp - M_eff       # zero rows: 0/(0+eps)=0, sliced off
        else:
            Mp = M_eff
    if pad_rows:
        x2d = jnp.pad(x2d, ((0, pad_rows), (0, 0)))
    grid_m = Mp // TM

    w2d = weight.reshape(1, D)
    w_itemsize = jnp.dtype(weight.dtype).itemsize

    vmem_need = 4 * TM * Dp * itemsize + 2 * D * w_itemsize
    vmem_limit = min(int(cap * 0.9), max(vmem_need + (2 << 20), 32 << 20))

    kernel = functools.partial(
        _rmsnorm_kernel, eps=eps, d=D, fold=fold, compute_dtype=compute_dtype
    )

    out = pl.pallas_call(
        kernel,
        out_shape=jax.ShapeDtypeStruct((Mp, Dp), x.dtype),
        grid=(grid_m,),
        in_specs=[
            # Streamed token tiles: Pallas double-buffers the HBM<->VMEM DMAs.
            pl.BlockSpec((TM, Dp), lambda i: (i, 0)),
            # Weight: constant index_map -> fetched once, VMEM-resident.
            pl.BlockSpec((1, D), lambda i: (0, 0)),
        ],
        out_specs=pl.BlockSpec((TM, Dp), lambda i: (i, 0)),
        compiler_params=pltpu.CompilerParams(
            dimension_semantics=("parallel",),
            vmem_limit_bytes=vmem_limit,
        ),
    )(x2d, w2d)

    if pad_rows:
        out = out[:M_eff]
    return out.reshape(orig_shape)


if __name__ == "__main__":
    eps = 1e-6
    key = jax.random.PRNGKey(0)
    k1, k2, k3, k4 = jax.random.split(key, 4)

    def reference(x, w, eps):
        x32 = x.astype(jnp.float32)
        norm = jnp.linalg.norm(x32, axis=-1, keepdims=True) * x.shape[-1] ** (-0.5)
        return w.astype(jnp.float32) * x32 / (norm + eps)

    # Case 1: module-sized f32 input (batch=2, seq=8, hidden=32) -> fold path.
    x1 = jax.random.normal(k1, (2, 8, 32), jnp.float32)
    w1 = 1.0 + 0.1 * jax.random.normal(k2, (32,), jnp.float32)
    o1 = rmsnorm_pallas(x1, w1, eps=eps)
    jax.block_until_ready(o1)
    assert jnp.allclose(o1, reference(x1, w1, eps), atol=1e-5, rtol=1e-5), "f32 mismatch"

    # Case 2: bf16 I/O, lane-aligned hidden, multi-tile grid (bf16-native store).
    x2 = jax.random.normal(k3, (4, 64, 128), jnp.float32).astype(jnp.bfloat16)
    w2 = (1.0 + 0.1 * jax.random.normal(k4, (128,), jnp.float32)).astype(jnp.bfloat16)
    o2 = rmsnorm_pallas(x2, w2, eps=eps, max_block_tokens=64)
    jax.block_until_ready(o2)
    assert jnp.allclose(o2.astype(jnp.float32), reference(x2, w2, eps),
                        atol=3e-2, rtol=3e-2), "bf16 mismatch"

    # Case 3: ragged token count exercising the (rare) pad fallback.
    x3 = jax.random.normal(k1, (5, 4, 128), jnp.float32)
    w3 = 1.0 + 0.1 * jax.random.normal(k2, (128,), jnp.float32)
    o3 = rmsnorm_pallas(x3, w3, eps=eps, max_block_tokens=16)
    jax.block_until_ready(o3)
    assert jnp.allclose(o3, reference(x3, w3, eps), atol=1e-5, rtol=1e-5), "ragged mismatch"

    print("KERNEL_OK")
</pallas_src>

<mosaic_0001>
module attributes {stable_mosaic.version = 11 : i64} {
  func.func @_rmsnorm_kernel(%arg0: i32, %arg1: memref<4x128xf32, #tpu.memory_space<vmem>>, %arg2: memref<1x32xf32, #tpu.memory_space<vmem>>, %arg3: memref<4x128xf32, #tpu.memory_space<vmem>>) attributes {dimension_semantics = [#tpu.dimension_semantics<parallel>], iteration_bounds = array<i64: 1>, scalar_prefetch = 0 : i64, scratch_operands = 0 : i64, tpu.core_type = #tpu.core_type<tc>, window_params = [{transform_indices = @transform_0, window_bounds = array<i64: 4, 128>}, {pipeline_mode = #tpu.pipeline_mode<synchronous>, transform_indices = @transform_1, window_bounds = array<i64: 1, 32>}, {transform_indices = @transform_2, window_bounds = array<i64: 4, 128>}]} {
    %c0 = arith.constant 0 : index
    %c0_0 = arith.constant 0 : index
    %0 = vector.load %arg1[%c0, %c0_0] : memref<4x128xf32, #tpu.memory_space<vmem>>, vector<4x128xf32>
    %c0_1 = arith.constant 0 : index
    %c0_2 = arith.constant 0 : index
    %1 = vector.load %arg2[%c0_1, %c0_2] : memref<1x32xf32, #tpu.memory_space<vmem>>, vector<1x32xf32>
    %2 = vector.extract_strided_slice %0 {offsets = [0, 0], sizes = [4, 32], strides = [1, 1]} : vector<4x128xf32> to vector<4x32xf32>
    %3 = arith.mulf %2, %2 : vector<4x32xf32>
    %cst = arith.constant dense<0.000000e+00> : vector<4xf32>
    %4 = vector.multi_reduction <add>, %3, %cst [1] : vector<4x32xf32> to vector<4xf32>
    %5 = vector.shape_cast %4 : vector<4xf32> to vector<4x1xf32>
    %cst_3 = arith.constant 3.125000e-02 : f32
    %6 = vector.broadcast %cst_3 : f32 to vector<4x1xf32>
    %7 = arith.mulf %5, %6 : vector<4x1xf32>
    %8 = math.sqrt %7 : vector<4x1xf32>
    %cst_4 = arith.constant 9.99999997E-7 : f32
    %9 = vector.broadcast %cst_4 : f32 to vector<4x1xf32>
    %10 = arith.addf %8, %9 : vector<4x1xf32>
    %11 = tpu.reciprocal %10 : vector<4x1xf32> -> vector<4x1xf32>
    %12 = vector.broadcast %1 : vector<1x32xf32> to vector<4x32xf32>
    %13 = arith.mulf %12, %2 : vector<4x32xf32>
    %14 = vector.broadcast %11 : vector<4x1xf32> to vector<4x32xf32>
    %15 = arith.mulf %13, %14 : vector<4x32xf32>
    %c0_5 = arith.constant 0 : index
    %c0_6 = arith.constant 0 : index
    %16 = vector.load %arg3[%c0_5, %c0_6] : memref<4x128xf32, #tpu.memory_space<vmem>>, vector<4x32xf32>
    tpu.vector_store %arg3[%c0_5, %c0_6], %15 {strides = array<i32>} : memref<4x128xf32, #tpu.memory_space<vmem>>, vector<4x32xf32>,
    %17 = vector.extract_strided_slice %0 {offsets = [0, 32], sizes = [4, 32], strides = [1, 1]} : vector<4x128xf32> to vector<4x32xf32>
    %18 = arith.mulf %17, %17 : vector<4x32xf32>
    %cst_7 = arith.constant dense<0.000000e+00> : vector<4xf32>
    %19 = vector.multi_reduction <add>, %18, %cst_7 [1] : vector<4x32xf32> to vector<4xf32>
    %20 = vector.shape_cast %19 : vector<4xf32> to vector<4x1xf32>
    %cst_8 = arith.constant 3.125000e-02 : f32
    %21 = vector.broadcast %cst_8 : f32 to vector<4x1xf32>
    %22 = arith.mulf %20, %21 : vector<4x1xf32>
    %23 = math.sqrt %22 : vector<4x1xf32>
    %cst_9 = arith.constant 9.99999997E-7 : f32
    %24 = vector.broadcast %cst_9 : f32 to vector<4x1xf32>
    %25 = arith.addf %23, %24 : vector<4x1xf32>
    %26 = tpu.reciprocal %25 : vector<4x1xf32> -> vector<4x1xf32>
    %27 = vector.broadcast %1 : vector<1x32xf32> to vector<4x32xf32>
    %28 = arith.mulf %27, %17 : vector<4x32xf32>
    %29 = vector.broadcast %26 : vector<4x1xf32> to vector<4x32xf32>
    %30 = arith.mulf %28, %29 : vector<4x32xf32>
    %c0_10 = arith.constant 0 : index
    %c32 = arith.constant 32 : index
    %31 = vector.load %arg3[%c0_10, %c32] : memref<4x128xf32, #tpu.memory_space<vmem>>, vector<4x32xf32>
    tpu.vector_store %arg3[%c0_10, %c32], %30 {strides = array<i32>} : memref<4x128xf32, #tpu.memory_space<vmem>>, vector<4x32xf32>,
    %32 = vector.extract_strided_slice %0 {offsets = [0, 64], sizes = [4, 32], strides = [1, 1]} : vector<4x128xf32> to vector<4x32xf32>
    %33 = arith.mulf %32, %32 : vector<4x32xf32>
    %cst_11 = arith.constant dense<0.000000e+00> : vector<4xf32>
    %34 = vector.multi_reduction <add>, %33, %cst_11 [1] : vector<4x32xf32> to vector<4xf32>
    %35 = vector.shape_cast %34 : vector<4xf32> to vector<4x1xf32>
    %cst_12 = arith.constant 3.125000e-02 : f32
    %36 = vector.broadcast %cst_12 : f32 to vector<4x1xf32>
    %37 = arith.mulf %35, %36 : vector<4x1xf32>
    %38 = math.sqrt %37 : vector<4x1xf32>
    %cst_13 = arith.constant 9.99999997E-7 : f32
    %39 = vector.broadcast %cst_13 : f32 to vector<4x1xf32>
    %40 = arith.addf %38, %39 : vector<4x1xf32>
    %41 = tpu.reciprocal %40 : vector<4x1xf32> -> vector<4x1xf32>
    %42 = vector.broadcast %1 : vector<1x32xf32> to vector<4x32xf32>
    %43 = arith.mulf %42, %32 : vector<4x32xf32>
    %44 = vector.broadcast %41 : vector<4x1xf32> to vector<4x32xf32>
    %45 = arith.mulf %43, %44 : vector<4x32xf32>
    %c0_14 = arith.constant 0 : index
    %c64 = arith.constant 64 : index
    %46 = vector.load %arg3[%c0_14, %c64] : memref<4x128xf32, #tpu.memory_space<vmem>>, vector<4x32xf32>
    tpu.vector_store %arg3[%c0_14, %c64], %45 {strides = array<i32>} : memref<4x128xf32, #tpu.memory_space<vmem>>, vector<4x32xf32>,
    %47 = vector.extract_strided_slice %0 {offsets = [0, 96], sizes = [4, 32], strides = [1, 1]} : vector<4x128xf32> to vector<4x32xf32>
    %48 = arith.mulf %47, %47 : vector<4x32xf32>
    %cst_15 = arith.constant dense<0.000000e+00> : vector<4xf32>
    %49 = vector.multi_reduction <add>, %48, %cst_15 [1] : vector<4x32xf32> to vector<4xf32>
    %50 = vector.shape_cast %49 : vector<4xf32> to vector<4x1xf32>
    %cst_16 = arith.constant 3.125000e-02 : f32
    %51 = vector.broadcast %cst_16 : f32 to vector<4x1xf32>
    %52 = arith.mulf %50, %51 : vector<4x1xf32>
    %53 = math.sqrt %52 : vector<4x1xf32>
    %cst_17 = arith.constant 9.99999997E-7 : f32
    %54 = vector.broadcast %cst_17 : f32 to vector<4x1xf32>
    %55 = arith.addf %53, %54 : vector<4x1xf32>
    %56 = tpu.reciprocal %55 : vector<4x1xf32> -> vector<4x1xf32>
    %57 = vector.broadcast %1 : vector<1x32xf32> to vector<4x32xf32>
    %58 = arith.mulf %57, %47 : vector<4x32xf32>
    %59 = vector.broadcast %56 : vector<4x1xf32> to vector<4x32xf32>
    %60 = arith.mulf %58, %59 : vector<4x32xf32>
    %c0_18 = arith.constant 0 : index
    %c96 = arith.constant 96 : index
    %61 = vector.load %arg3[%c0_18, %c96] : memref<4x128xf32, #tpu.memory_space<vmem>>, vector<4x32xf32>
    tpu.vector_store %arg3[%c0_18, %c96], %60 {strides = array<i32>} : memref<4x128xf32, #tpu.memory_space<vmem>>, vector<4x32xf32>,
    return
  }
  func.func @transform_0(%arg0: i32) -> (i32, i32) {
    %c0_i32 = arith.constant 0 : i32
    %c0_i32_0 = arith.constant 0 : i32
    return %arg0, %c0_i32 : i32, i32
  }
  func.func @transform_1(%arg0: i32) -> (i32, i32) {
    %c0_i32 = arith.constant 0 : i32
    %c0_i32_0 = arith.constant 0 : i32
    %c0_i32_1 = arith.constant 0 : i32
    return %c0_i32, %c0_i32_0 : i32, i32
  }
  func.func @transform_2(%arg0: i32) -> (i32, i32) {
    %c0_i32 = arith.constant 0 : i32
    %c0_i32_0 = arith.constant 0 : i32
    return %arg0, %c0_i32 : i32, i32
  }
}

</mosaic_0001>

<llo_original>
// kernel: tpu_custom_call.1
$region0: #{tpu_custom_call.1}
  #allocation0 [shape = 'u32[]', space=smem, size = 0x4, offset = 0x4, fixed_abs, tag = 'smem constant byte address 0x4 - core index']
  #allocation1 [shape = 'u32[144,128]{1,0:T(1,128)}', space=vmem, size = 0x12000, scoped, tag = 'internal scratch']
  %s0 = inlined_call_operand.hbm [shape: f32[4,128], index: 0, kind: input, shape index: {}]
  %s1 = inlined_call_operand.vmem [shape: f32[1,32], index: 1, kind: input, shape index: {}]
  %s2 = inlined_call_operand.hbm [shape: f32[4,128], index: 2, kind: output, shape index: {}]
  %s3 = sld [smem:[#allocation0]]
  $region22: #{tpu_custom_call.1} parent=0
    _
  %s5 = ssub.s32 1, %s3
  %s6 = scalar_select 0, %s5, %s3
  $region1: #{tpu_custom_call.1} parent=0
    #allocation2 [shape = 'u8[2048]{0}', space=vmem, size = 0x800, scoped, tag = 'input window, operand 0, single buffered']
    #allocation3 [shape = 's32[1]{0}', space=sflag, size = 0x4, scoped, tag = 'scoped memory for tpu_custom_call.1']
    #allocation4 [shape = 's32[1]{0}', space=sflag, size = 0x4, scoped, tag = 'scoped memory for tpu_custom_call.1']
    #allocation5 [shape = 'u8[2048]{0}', space=vmem, size = 0x800, scoped, tag = 'output window, operand 0, single buffered']
    %7 = vsyncpa [#allocation3], 0
    %8 = vsyncpa [#allocation4], 0
    // Predicated region
    $region2: #{tpu_custom_call.1} parent=1 // pred_check
      _
    $region3: #{tpu_custom_call.1} parent=1 // pred_check_branch
      %10 = sbr.rel (0) target = $region5
    $region4: #{tpu_custom_call.1} parent=1 // pred_region
      %s12 = ssub.s32 64, 64
      %13 = vsyncadd [#allocation3], %s12
      %s15 = sshll.u32 [#allocation2], 4
      %s16 = int_to_ptr.vmem [resolvable:$true] %s15
      %18 = dma.hbm_to_vmem [thread:$0]  %s0, 64, %s16, [#allocation3]
    $region5: #{tpu_custom_call.1} parent=1 // pred_fallthru
      _
    // Predicated region
    $region6: #{tpu_custom_call.1} parent=1 // pred_check
      _
    $region7: #{tpu_custom_call.1} parent=1 // pred_check_branch
      %20 = sbr.rel (0) target = $region9
    $region8: #{tpu_custom_call.1} parent=1 // pred_region
      _
    $region9: #{tpu_custom_call.1} parent=1 // pred_fallthru
      _
    // Predicated region
    $region10: #{tpu_custom_call.1} parent=1 // pred_check
      _
    $region11: #{tpu_custom_call.1} parent=1 // pred_check_branch
      %22 = sbr.rel (0) target = $region13
    $region12: #{tpu_custom_call.1} parent=1 // pred_region
      %23 = dma.done [#allocation3], 64
    $region13: #{tpu_custom_call.1} parent=1 // pred_fallthru
      _
    %v24 = vld [vmem:[#allocation2] sm:$0xf]
    %v25 = vld [vmem:[%s1] sm:$0x1]
    %v26 = vmul.f32 %v24, %v24
    %vm27 = vcmask 257024
    %v28 = vsel %vm27, %v26, 0.0
    %29 = vadd.xlane.f32.xlu0 %v28
    %v30 = vpop.xlane.xlu0 %29
    %v31 = vmul.f32 %v30, 0.03125
    %v32 = vrsqrt.pop %v31
    %v33 = vmul.f32 %v31, %v32
    %vm34 = vcmp.eq.f32.partialorder %v31, inf
    %v35 = vsel %vm34, %v31, %v33
    %vm36 = vcmp.eq.f32.partialorder %v31, 0.0
    %v37 = vand.u32 %v31, 2147483648
    %v38 = vsel %vm36, %v37, %v35
    %v39 = vadd.f32 %v38, 1e-06
    %v40 = vrcp.pop %v39
    %v42 = vlaneseq
    %v43 = vshrl.u32 %v42, 7
    %v44 = vsub.s32 0, %v43
    %v45 = vrot.slane %v25, %v44
    %v47 = vmul.f32 %v45, %v24
    %v48 = vmul.f32 %v47, %v40
    %49 = vst.msk [vmem:[#allocation5] sm:$0xf] %vm27, %v48
    %51 = vrot.lane.b32.xlu0 %v26, 96
    %v52 = vpop.permute.xlu0 %51
    %v54 = vsel %vm27, %v52, 0.0
    %55 = vadd.xlane.f32.xlu0 %v54
    %v56 = vpop.xlane.xlu0 %55
    %v57 = vmul.f32 %v56, 0.03125
    %v58 = vrsqrt.pop %v57
    %v59 = vmul.f32 %v57, %v58
    %vm60 = vcmp.eq.f32.partialorder %v57, inf
    %v61 = vsel %vm60, %v57, %v59
    %vm62 = vcmp.eq.f32.partialorder %v57, 0.0
    %v63 = vand.u32 %v57, 2147483648
    %v64 = vsel %vm62, %v63, %v61
    %v65 = vadd.f32 %v64, 1e-06
    %v66 = vrcp.pop %v65
    %68 = vrot.lane.b32.xlu0 %v24, 96
    %v69 = vpop.permute.xlu0 %68
    %v71 = vmul.f32 %v45, %v69
    %v72 = vmul.f32 %v71, %v66
    %74 = vrot.lane.b32.xlu0 %v72, 32
    %v75 = vpop.permute.xlu0 %74
    %vm77 = vcmask 519424
    %78 = vst.msk [vmem:[#allocation5] sm:$0xf] %vm77, %v75
    %79 = vrot.lane.b32.xlu0 %v26, 64
    %v80 = vpop.permute.xlu0 %79
    %v82 = vsel %vm27, %v80, 0.0
    %83 = vadd.xlane.f32.xlu0 %v82
    %v84 = vpop.xlane.xlu0 %83
    %v85 = vmul.f32 %v84, 0.03125
    %v86 = vrsqrt.pop %v85
    %v87 = vmul.f32 %v85, %v86
    %vm88 = vcmp.eq.f32.partialorder %v85, inf
    %v89 = vsel %vm88, %v85, %v87
    %vm90 = vcmp.eq.f32.partialorder %v85, 0.0
    %v91 = vand.u32 %v85, 2147483648
    %v92 = vsel %vm90, %v91, %v89
    %v93 = vadd.f32 %v92, 1e-06
    %v94 = vrcp.pop %v93
    %95 = vrot.lane.b32.xlu0 %v24, 64
    %v96 = vpop.permute.xlu0 %95
    %v98 = vmul.f32 %v45, %v96
    %v99 = vmul.f32 %v98, %v94
    %101 = vrot.lane.b32.xlu0 %v99, 64
    %v102 = vpop.permute.xlu0 %101
    %vm104 = vcmask 781824
    %105 = vst.msk [vmem:[#allocation5] sm:$0xf] %vm104, %v102
    %106 = vrot.lane.b32.xlu0 %v26, 32
    %v107 = vpop.permute.xlu0 %106
    %v109 = vsel %vm27, %v107, 0.0
    %110 = vadd.xlane.f32.xlu0 %v109
    %v111 = vpop.xlane.xlu0 %110
    %v112 = vmul.f32 %v111, 0.03125
    %v113 = vrsqrt.pop %v112
    %v114 = vmul.f32 %v112, %v113
    %vm115 = vcmp.eq.f32.partialorder %v112, inf
    %v116 = vsel %vm115, %v112, %v114
    %vm117 = vcmp.eq.f32.partialorder %v112, 0.0
    %v118 = vand.u32 %v112, 2147483648
    %v119 = vsel %vm117, %v118, %v116
    %v120 = vadd.f32 %v119, 1e-06
    %v121 = vrcp.pop %v120
    %122 = vrot.lane.b32.xlu0 %v24, 32
    %v123 = vpop.permute.xlu0 %122
    %v125 = vmul.f32 %v45, %v123
    %v126 = vmul.f32 %v125, %v121
    %128 = vrot.lane.b32.xlu0 %v126, 96
    %v129 = vpop.permute.xlu0 %128
    %vm131 = vcmask 1044224
    %132 = vst.msk [vmem:[#allocation5] sm:$0xf] %vm131, %v129
    // Predicated region
    $region14: #{tpu_custom_call.1} parent=1 // pred_check
      _
    $region15: #{tpu_custom_call.1} parent=1 // pred_check_branch
      %134 = sbr.rel (0) target = $region17
    $region16: #{tpu_custom_call.1} parent=1 // pred_region
      %s136 = ssub.s32 64, 64
      %137 = vsyncadd [#allocation4], %s136
      %s139 = sshll.u32 [#allocation5], 4
      %s140 = int_to_ptr.vmem [resolvable:$true] %s139
      %142 = dma.vmem_to_hbm [thread:$0]  %s140, 64, %s2, [#allocation4]
    $region17: #{tpu_custom_call.1} parent=1 // pred_fallthru
      _
    // Predicated region
    $region18: #{tpu_custom_call.1} parent=1 // pred_check
      _
    $region19: #{tpu_custom_call.1} parent=1 // pred_check_branch
      %144 = sbr.rel (0) target = $region21
    $region20: #{tpu_custom_call.1} parent=1 // pred_region
      %145 = dma.done [#allocation4], 64
    $region21: #{tpu_custom_call.1} parent=1 // pred_fallthru
      _
    %146 = vsyncpa [#allocation3], 1
    %147 = vsyncpa [#allocation4], 1

</llo_original>
